<compile_context>
chip_gen: v5e
topology: v5e:2x2
jax: 0.10.0
libtpu: 0.0.40
codegen_flags: <defaults>
</compile_context>

<pallas_src>
from functools import partial

import numpy as np
import jax
import jax.numpy as jnp
from jax import lax
from jax.experimental import pallas as pl
from jax.experimental.pallas import tpu as pltpu

N_EMBD = 64
BLOCK_SIZE = 64
DROPOUT_P = 0.4
# keep an element iff bits >= DROP_THRESH  =>  P(keep) = 1 - p  (exact integer threshold)
DROP_THRESH = np.uint32(round(DROPOUT_P * (1 << 32)))
DROP_SCALE = np.float32(1.0 / (1.0 - DROPOUT_P))


def head_kernel(x_ref, wk_ref, wq_ref, wv_ref, *rest, scale, training, bf16_matmul):
    # rest = (bits_ref, o_ref) when training else (o_ref,)
    if training:
        bits_ref, o_ref = rest
    else:
        (o_ref,) = rest

    x = x_ref[0]          # (T, C) float32 — one full batch element per grid step
    wk = wk_ref[...]
    wq = wq_ref[...]
    wv = wv_ref[...]

    if bf16_matmul:       # v6e/v7x: bf16 MXU operands, f32 accumulation
        x, wk, wq, wv = (a.astype(jnp.bfloat16) for a in (x, wk, wq, wv))

    k = jnp.dot(x, wk, preferred_element_type=jnp.float32)   # (T, hs)
    q = jnp.dot(x, wq, preferred_element_type=jnp.float32)   # (T, hs)
    v = jnp.dot(x, wv, preferred_element_type=jnp.float32)   # (T, hs)

    # q @ k^T without an explicit transpose (contract over the head dim)
    wei = lax.dot_general(q, k, (((1,), (1,)), ((), ())),
                          preferred_element_type=jnp.float32) * jnp.float32(scale)  # (T, T)

    # causal mask (lower-triangular keep)
    T = wei.shape[0]
    rows = lax.broadcasted_iota(jnp.int32, (T, T), 0)
    cols = lax.broadcasted_iota(jnp.int32, (T, T), 1)
    wei = jnp.where(cols <= rows, wei, -jnp.inf)

    # numerically-stable softmax along the last axis
    m = jnp.max(wei, axis=-1, keepdims=True)
    e = jnp.exp(wei - m)
    s = jnp.sum(e, axis=-1, keepdims=True)
    p = e / s

    if training:
        # inverted dropout on the attention weights; integer threshold, single compare + select
        bits = bits_ref[0]                                    # (T, T) uint32
        keep = bits >= jnp.uint32(DROP_THRESH)
        p = jnp.where(keep, p * DROP_SCALE, jnp.float32(0.0))

    pv = p.astype(v.dtype) if bf16_matmul else p
    out = jnp.dot(pv, v, preferred_element_type=jnp.float32)  # (T, hs)
    o_ref[0] = out.astype(o_ref.dtype)


def head_attention(x, wk, wq, wv, *, training=False, rng_key=None, bf16_matmul=False):
    """x: (B, T, C=n_embd) f32;  wk/wq/wv: (C, head_size) f32 (transposed nn.Linear weights)."""
    B, T, C = x.shape
    hs = wk.shape[1]
    scale = float(C) ** (-0.5)

    kernel = partial(head_kernel, scale=scale, training=training, bf16_matmul=bf16_matmul)

    in_specs = [
        pl.BlockSpec((1, T, C), lambda b: (b, 0, 0)),   # one batch element per step
        pl.BlockSpec((C, hs), lambda b: (0, 0)),        # Wk (resident)
        pl.BlockSpec((C, hs), lambda b: (0, 0)),        # Wq (resident)
        pl.BlockSpec((C, hs), lambda b: (0, 0)),        # Wv (resident)
    ]
    args = [x, wk, wq, wv]

    if training:
        if rng_key is None:
            rng_key = jax.random.PRNGKey(0)
        # TODO(synk): random stream cannot bit-match torch's Philox; Bernoulli(1-p)+1/(1-p) scale
        # semantics are identical.
        bits = jax.random.bits(rng_key, (B, T, T), dtype=jnp.uint32)
        in_specs.append(pl.BlockSpec((1, T, T), lambda b: (b, 0, 0)))
        args.append(bits)

    out = pl.pallas_call(
        kernel,
        out_shape=jax.ShapeDtypeStruct((B, T, hs), x.dtype),
        grid=(B,),
        in_specs=in_specs,
        out_specs=pl.BlockSpec((1, T, hs), lambda b: (b, 0, 0)),
        compiler_params=pltpu.CompilerParams(dimension_semantics=("parallel",)),
    )(*args)
    return out


if __name__ == "__main__":
    key = jax.random.PRNGKey(0)
    kx, kk, kq, kv, kd = jax.random.split(key, 5)

    B, T, C, head_size = 2, 8, N_EMBD, 16
    assert T <= BLOCK_SIZE
    x = jax.random.normal(kx, (B, T, C), jnp.float32)

    # PyTorch nn.Linear default init U(-1/sqrt(fan_in), 1/sqrt(fan_in)); stored (in, out)
    lim = 1.0 / np.sqrt(C)
    wk = jax.random.uniform(kk, (C, head_size), jnp.float32, -lim, lim)
    wq = jax.random.uniform(kq, (C, head_size), jnp.float32, -lim, lim)
    wv = jax.random.uniform(kv, (C, head_size), jnp.float32, -lim, lim)

    # eval-mode forward (dropout is identity) — check against a pure-JAX reference
    out_eval = head_attention(x, wk, wq, wv, training=False)
    jax.block_until_ready(out_eval)

    def ref(xr):
        k = xr @ wk; q = xr @ wq; v = xr @ wv
        wei = (q @ jnp.swapaxes(k, -1, -2)) * (C ** -0.5)
        mask = jnp.tril(jnp.ones((T, T), bool))
        wei = jnp.where(mask[None], wei, -jnp.inf)
        wei = jax.nn.softmax(wei, axis=-1)
        return wei @ v

    np.testing.assert_allclose(np.asarray(out_eval), np.asarray(ref(x)), rtol=2e-2, atol=2e-2)

    # training-mode forward (dropout active on the attention weights)
    out_train = head_attention(x, wk, wq, wv, training=True, rng_key=kd)
    jax.block_until_ready(out_train)

    assert out_eval.shape == (B, T, head_size) and out_eval.dtype == x.dtype
    assert out_train.shape == (B, T, head_size)
    print("KERNEL_OK")
</pallas_src>

<mosaic_0001>
module attributes {stable_mosaic.version = 11 : i64} {
  func.func @head_kernel(%arg0: i32, %arg1: memref<1x8x64xf32, #tpu.memory_space<vmem>>, %arg2: memref<64x16xf32, #tpu.memory_space<vmem>>, %arg3: memref<64x16xf32, #tpu.memory_space<vmem>>, %arg4: memref<64x16xf32, #tpu.memory_space<vmem>>, %arg5: memref<1x8x16xf32, #tpu.memory_space<vmem>>) attributes {dimension_semantics = [#tpu.dimension_semantics<parallel>], iteration_bounds = array<i64: 2>, scalar_prefetch = 0 : i64, scratch_operands = 0 : i64, tpu.core_type = #tpu.core_type<tc>, window_params = [{transform_indices = @transform_0, window_bounds = array<i64: 1, 8, 64>}, {pipeline_mode = #tpu.pipeline_mode<synchronous>, transform_indices = @transform_1, window_bounds = array<i64: 64, 16>}, {pipeline_mode = #tpu.pipeline_mode<synchronous>, transform_indices = @transform_2, window_bounds = array<i64: 64, 16>}, {pipeline_mode = #tpu.pipeline_mode<synchronous>, transform_indices = @transform_3, window_bounds = array<i64: 64, 16>}, {transform_indices = @transform_4, window_bounds = array<i64: 1, 8, 16>}]} {
    %c0 = arith.constant 0 : index
    %c0_0 = arith.constant 0 : index
    %c0_1 = arith.constant 0 : index
    %0 = vector.load %arg1[%c0, %c0_0, %c0_1] : memref<1x8x64xf32, #tpu.memory_space<vmem>>, vector<1x8x64xf32>
    %1 = vector.shape_cast %0 : vector<1x8x64xf32> to vector<8x64xf32>
    %c0_2 = arith.constant 0 : index
    %c0_3 = arith.constant 0 : index
    %2 = vector.load %arg2[%c0_2, %c0_3] : memref<64x16xf32, #tpu.memory_space<vmem>>, vector<64x16xf32>
    %c0_4 = arith.constant 0 : index
    %c0_5 = arith.constant 0 : index
    %3 = vector.load %arg3[%c0_4, %c0_5] : memref<64x16xf32, #tpu.memory_space<vmem>>, vector<64x16xf32>
    %c0_6 = arith.constant 0 : index
    %c0_7 = arith.constant 0 : index
    %4 = vector.load %arg4[%c0_6, %c0_7] : memref<64x16xf32, #tpu.memory_space<vmem>>, vector<64x16xf32>
    %cst = arith.constant dense<0.000000e+00> : vector<8x16xf32>
    %5 = tpu.matmul %1, %2, %cst {dimension_numbers = #tpu.dot_dimension_numbers<[1], [0], [0], [1], [0, 0, 1, 1], [], []>} : vector<8x64xf32>, vector<64x16xf32>, vector<8x16xf32> -> vector<8x16xf32>
    %cst_8 = arith.constant dense<0.000000e+00> : vector<8x16xf32>
    %6 = tpu.matmul %1, %3, %cst_8 {dimension_numbers = #tpu.dot_dimension_numbers<[1], [0], [0], [1], [0, 0, 1, 1], [], []>} : vector<8x64xf32>, vector<64x16xf32>, vector<8x16xf32> -> vector<8x16xf32>
    %cst_9 = arith.constant dense<0.000000e+00> : vector<8x16xf32>
    %7 = tpu.matmul %1, %4, %cst_9 {dimension_numbers = #tpu.dot_dimension_numbers<[1], [0], [0], [1], [0, 0, 1, 1], [], []>} : vector<8x64xf32>, vector<64x16xf32>, vector<8x16xf32> -> vector<8x16xf32>
    %cst_10 = arith.constant dense<0.000000e+00> : vector<8x8xf32>
    %8 = tpu.matmul %6, %5, %cst_10 {dimension_numbers = #tpu.dot_dimension_numbers<[1], [1], [0], [0], [0, 0, 1, 0], [], []>} : vector<8x16xf32>, vector<8x16xf32>, vector<8x8xf32> -> vector<8x8xf32>
    %cst_11 = arith.constant 1.250000e-01 : f32
    %9 = vector.broadcast %cst_11 : f32 to vector<8x8xf32>
    %10 = arith.mulf %8, %9 : vector<8x8xf32>
    %11 = tpu.iota {dimensions = array<i32: 0>} : vector<8x8xi32>
    %12 = tpu.iota {dimensions = array<i32: 1>} : vector<8x8xi32>
    %13 = arith.cmpi sle, %12, %11 : vector<8x8xi32>
    %cst_12 = arith.constant 0xFF800000 : f32
    %14 = vector.broadcast %cst_12 : f32 to vector<8x8xf32>
    %15 = arith.select %13, %10, %14 : vector<8x8xi1>, vector<8x8xf32>
    %cst_13 = arith.constant dense<0xFF800000> : vector<8xf32>
    %16 = vector.multi_reduction <maximumf>, %15, %cst_13 [1] : vector<8x8xf32> to vector<8xf32>
    %17 = vector.shape_cast %16 : vector<8xf32> to vector<8x1xf32>
    %18 = vector.broadcast %17 : vector<8x1xf32> to vector<8x8xf32>
    %19 = arith.subf %15, %18 : vector<8x8xf32>
    %20 = math.exp %19 : vector<8x8xf32>
    %cst_14 = arith.constant dense<0.000000e+00> : vector<8xf32>
    %21 = vector.multi_reduction <add>, %20, %cst_14 [1] : vector<8x8xf32> to vector<8xf32>
    %22 = vector.shape_cast %21 : vector<8xf32> to vector<8x1xf32>
    %23 = vector.broadcast %22 : vector<8x1xf32> to vector<8x8xf32>
    %24 = arith.divf %20, %23 : vector<8x8xf32>
    %cst_15 = arith.constant dense<0.000000e+00> : vector<8x16xf32>
    %25 = tpu.matmul %24, %7, %cst_15 {dimension_numbers = #tpu.dot_dimension_numbers<[1], [0], [0], [1], [0, 0, 1, 1], [], []>} : vector<8x8xf32>, vector<8x16xf32>, vector<8x16xf32> -> vector<8x16xf32>
    %c0_16 = arith.constant 0 : index
    %c0_17 = arith.constant 0 : index
    %c0_18 = arith.constant 0 : index
    %26 = vector.load %arg5[%c0_16, %c0_17, %c0_18] : memref<1x8x16xf32, #tpu.memory_space<vmem>>, vector<1x8x16xf32>
    %27 = vector.shape_cast %26 : vector<1x8x16xf32> to vector<8x16xf32>
    %28 = vector.shape_cast %25 : vector<8x16xf32> to vector<1x8x16xf32>
    tpu.vector_store %arg5[%c0_16, %c0_17, %c0_18], %28 {strides = array<i32>} : memref<1x8x16xf32, #tpu.memory_space<vmem>>, vector<1x8x16xf32>,
    return
  }
  func.func @transform_0(%arg0: i32) -> (i32, i32, i32) {
    %c0_i32 = arith.constant 0 : i32
    %c0_i32_0 = arith.constant 0 : i32
    %c0_i32_1 = arith.constant 0 : i32
    return %arg0, %c0_i32, %c0_i32_0 : i32, i32, i32
  }
  func.func @transform_1(%arg0: i32) -> (i32, i32) {
    %c0_i32 = arith.constant 0 : i32
    %c0_i32_0 = arith.constant 0 : i32
    %c0_i32_1 = arith.constant 0 : i32
    return %c0_i32, %c0_i32_0 : i32, i32
  }
  func.func @transform_2(%arg0: i32) -> (i32, i32) {
    %c0_i32 = arith.constant 0 : i32
    %c0_i32_0 = arith.constant 0 : i32
    %c0_i32_1 = arith.constant 0 : i32
    return %c0_i32, %c0_i32_0 : i32, i32
  }
  func.func @transform_3(%arg0: i32) -> (i32, i32) {
    %c0_i32 = arith.constant 0 : i32
    %c0_i32_0 = arith.constant 0 : i32
    %c0_i32_1 = arith.constant 0 : i32
    return %c0_i32, %c0_i32_0 : i32, i32
  }
  func.func @transform_4(%arg0: i32) -> (i32, i32, i32) {
    %c0_i32 = arith.constant 0 : i32
    %c0_i32_0 = arith.constant 0 : i32
    %c0_i32_1 = arith.constant 0 : i32
    return %arg0, %c0_i32, %c0_i32_0 : i32, i32, i32
  }
}

</mosaic_0001>

<llo_original>
// kernel: tpu_custom_call.1
$region0: #{tpu_custom_call.1}
  #allocation0 [shape = 'u32[]', space=smem, size = 0x4, offset = 0x4, fixed_abs, tag = 'smem constant byte address 0x4 - core index']
  #allocation1 [shape = 'u32[72,128]{1,0:T(1,128)}', space=vmem, size = 0x9000, scoped, tag = 'internal scratch']
  %s0 = inlined_call_operand.vmem [shape: f32[2,8,64], index: 0, kind: input, shape index: {}]
  %s1 = inlined_call_operand.vmem [shape: f32[64,16], index: 1, kind: input, shape index: {}]
  %s2 = inlined_call_operand.vmem [shape: f32[64,16], index: 2, kind: input, shape index: {}]
  %s3 = inlined_call_operand.vmem [shape: f32[64,16], index: 3, kind: input, shape index: {}]
  %s4 = inlined_call_operand.hbm [shape: f32[2,8,16], index: 4, kind: output, shape index: {}]
  %s5 = sld [smem:[#allocation0]]
  $region49: #{tpu_custom_call.1} parent=0
    _
  %s7 = ssub.s32 1, %s5
  %s8 = scalar_select 0, %s7, %s5
  $region1: #{tpu_custom_call.1} parent=0
    #allocation2 [shape = 'u8[8192]{0}', space=vmem, size = 0x2000, scoped, tag = 'output window, operand 0']
    #allocation3 [shape = 's32[2]{0}', space=sflag, size = 0x8, scoped, tag = 'scoped memory for tpu_custom_call.1']
    %9 = vsyncpa [#allocation3], 0
    %s10 = scalar_lea.sflag [#allocation3], 1
    %11 = vsyncpa %s10, 0
    loop: start=0, step=1, limit=4
    $region2: #{tpu_custom_call.1} parent=1 // loop_pre_header
      _
    $region3: #{tpu_custom_call.1} parent=1 // loop_header
      %s13 = sphi 0, %s17
      %p14 = scmp.ge.s32.totalorder %s13, 4
      %s23 = sphi 0, %s25
      %s26 = sphi 0, %s23
      %s27 = sphi 0, %s26
      %s43 = sphi 0, %s27
      %s47 = sphi 0, %s47
      %s49 = sphi 0, %s47
      %s50 = sphi 0, %s49
      %s64 = sphi 0, %s50
      %s68 = sphi 0, %s68
      %s70 = sphi 0, %s68
      %s71 = sphi 0, %s70
      %s85 = sphi 0, %s71
      %s89 = sphi 0, %s89
      %s91 = sphi 0, %s89
      %s92 = sphi 0, %s91
      %s106 = sphi 0, %s92
      %s112 = sphi 0, %s114
      %s115 = sphi 0, %s112
      %s116 = sphi 0, %s115
      %s132 = sphi 0, %s116
    $region4: #{tpu_custom_call.1} parent=1 // loop_header_branch
      %16 = sbr.rel (%p14) target = $region8
    $region5: #{tpu_custom_call.1} parent=1 // loop_body
      %s18 = ssub.s32 %s13, 1
      %s19 = ssub.s32 %s13, 2
      %s20 = sadd.s32 %s13, 1
      %s21 = ssub.s32 %s13, %s20
      %p22 = scmp.eq.s32.totalorder %s21, 0
      %s24 = sadd.s32 %s23, 1
      %s25 = scalar_select %p22, %s23, %s24
      %p28 = pneg %p22
      %p29 = scmp.eq.s32.totalorder %s13, 1
      %p30 = por %p28, %p29
      %p31 = scmp.ne.s32.totalorder %s23, %s26
      %p32 = scmp.eq.s32.totalorder %s13, 0
      %p33 = por %p31, %p32
      %p34 = scmp.ne.s32.totalorder %s23, %s26
      %p35 = scmp.eq.s32.totalorder %s18, 1
      %p36 = por %p34, %p35
      %p37 = scmp.ne.s32.totalorder %s26, %s27
      %p38 = scmp.eq.s32.totalorder %s18, 0
      %p39 = por %p37, %p38
      %p40 = scmp.ne.s32.totalorder %s26, %s27
      %p41 = scmp.eq.s32.totalorder %s19, 1
      %p42 = por %p40, %p41
      %p44 = scmp.ne.s32.totalorder %s27, %s43
      %p45 = scmp.eq.s32.totalorder %s19, 0
      %p46 = por %p44, %p45
      %s48 = sadd.s32 %s47, 1
      %p51 = scmp.eq.s32.totalorder %s13, 1
      %p52 = scmp.ne.s32.totalorder %s47, %s49
      %p53 = scmp.eq.s32.totalorder %s13, 0
      %p54 = por %p52, %p53
      %p55 = scmp.ne.s32.totalorder %s47, %s49
      %p56 = scmp.eq.s32.totalorder %s18, 1
      %p57 = por %p55, %p56
      %p58 = scmp.ne.s32.totalorder %s49, %s50
      %p59 = scmp.eq.s32.totalorder %s18, 0
      %p60 = por %p58, %p59
      %p61 = scmp.ne.s32.totalorder %s49, %s50
      %p62 = scmp.eq.s32.totalorder %s19, 1
      %p63 = por %p61, %p62
      %p65 = scmp.ne.s32.totalorder %s50, %s64
      %p66 = scmp.eq.s32.totalorder %s19, 0
      %p67 = por %p65, %p66
      %s69 = sadd.s32 %s68, 1
      %p72 = scmp.eq.s32.totalorder %s13, 1
      %p73 = scmp.ne.s32.totalorder %s68, %s70
      %p74 = scmp.eq.s32.totalorder %s13, 0
      %p75 = por %p73, %p74
      %p76 = scmp.ne.s32.totalorder %s68, %s70
      %p77 = scmp.eq.s32.totalorder %s18, 1
      %p78 = por %p76, %p77
      %p79 = scmp.ne.s32.totalorder %s70, %s71
      %p80 = scmp.eq.s32.totalorder %s18, 0
      %p81 = por %p79, %p80
      %p82 = scmp.ne.s32.totalorder %s70, %s71
      %p83 = scmp.eq.s32.totalorder %s19, 1
      %p84 = por %p82, %p83
      %p86 = scmp.ne.s32.totalorder %s71, %s85
      %p87 = scmp.eq.s32.totalorder %s19, 0
      %p88 = por %p86, %p87
      %s90 = sadd.s32 %s89, 1
      %p93 = scmp.eq.s32.totalorder %s13, 1
      %p94 = scmp.ne.s32.totalorder %s89, %s91
      %p95 = scmp.eq.s32.totalorder %s13, 0
      %p96 = por %p94, %p95
      %p97 = scmp.ne.s32.totalorder %s89, %s91
      %p98 = scmp.eq.s32.totalorder %s18, 1
      %p99 = por %p97, %p98
      %p100 = scmp.ne.s32.totalorder %s91, %s92
      %p101 = scmp.eq.s32.totalorder %s18, 0
      %p102 = por %p100, %p101
      %p103 = scmp.ne.s32.totalorder %s91, %s92
      %p104 = scmp.eq.s32.totalorder %s19, 1
      %p105 = por %p103, %p104
      %p107 = scmp.ne.s32.totalorder %s92, %s106
      %p108 = scmp.eq.s32.totalorder %s19, 0
      %p109 = por %p107, %p108
      %s110 = ssub.s32 %s13, %s20
      %p111 = scmp.eq.s32.totalorder %s110, 0
      %s113 = sadd.s32 %s112, 1
      %s114 = scalar_select %p111, %s112, %s113
      %p117 = pneg %p111
      %p118 = scmp.eq.s32.totalorder %s13, 1
      %p119 = por %p117, %p118
      %p120 = scmp.ne.s32.totalorder %s112, %s115
      %p121 = scmp.eq.s32.totalorder %s13, 0
      %p122 = por %p120, %p121
      %p123 = scmp.ne.s32.totalorder %s112, %s115
      %p124 = scmp.eq.s32.totalorder %s18, 1
      %p125 = por %p123, %p124
      %p126 = scmp.ne.s32.totalorder %s115, %s116
      %p127 = scmp.eq.s32.totalorder %s18, 0
      %p128 = por %p126, %p127
      %p129 = scmp.ne.s32.totalorder %s115, %s116
      %p130 = scmp.eq.s32.totalorder %s19, 1
      %p131 = por %p129, %p130
      %p133 = scmp.ne.s32.totalorder %s116, %s132
      %p134 = scmp.eq.s32.totalorder %s19, 0
      %p135 = por %p133, %p134
      %p136 = scmp.le.s32.totalorder 1, %s13
      %p137 = scmp.lt.s32.totalorder %s13, 3
      %p138 = pnand %p136, %p137
      %p139 = pneg %p138
      // Predicated region
      $region9: #{tpu_custom_call.1} parent=5 // pred_check
        _
      $region10: #{tpu_custom_call.1} parent=5 // pred_check_branch
        %141 = sbr.rel (%p138) target = $region12
      $region11: #{tpu_custom_call.1} parent=5 // pred_region
        %s142 = ssub.s32 %s13, 1
        // Predicated region
        $region13: #{tpu_custom_call.1} parent=11 // pred_check
          %p143 = pneg %p60
        $region14: #{tpu_custom_call.1} parent=11 // pred_check_branch
          %145 = sbr.rel (%p143) target = $region16
        $region15: #{tpu_custom_call.1} parent=11 // pred_region
          _
        $region16: #{tpu_custom_call.1} parent=11 // pred_fallthru
          _
        // Predicated region
        $region17: #{tpu_custom_call.1} parent=11 // pred_check
          %p146 = pneg %p81
        $region18: #{tpu_custom_call.1} parent=11 // pred_check_branch
          %148 = sbr.rel (%p146) target = $region20
        $region19: #{tpu_custom_call.1} parent=11 // pred_region
          _
        $region20: #{tpu_custom_call.1} parent=11 // pred_fallthru
          _
        // Predicated region
        $region21: #{tpu_custom_call.1} parent=11 // pred_check
          %p149 = pneg %p102
        $region22: #{tpu_custom_call.1} parent=11 // pred_check_branch
          %151 = sbr.rel (%p149) target = $region24
        $region23: #{tpu_custom_call.1} parent=11 // pred_region
          _
        $region24: #{tpu_custom_call.1} parent=11 // pred_fallthru
          _
      $region12: #{tpu_custom_call.1} parent=5 // pred_fallthru
        _
      %p152 = scmp.lt.s32.totalorder %s13, 2
      // Predicated region
      $region25: #{tpu_custom_call.1} parent=5 // pred_check
        %p153 = pneg %p152
      $region26: #{tpu_custom_call.1} parent=5 // pred_check_branch
        %155 = sbr.rel (%p153) target = $region28
      $region27: #{tpu_custom_call.1} parent=5 // pred_region
        // Predicated region
        $region29: #{tpu_custom_call.1} parent=27 // pred_check
          %p156 = pneg %p33
        $region30: #{tpu_custom_call.1} parent=27 // pred_check_branch
          %158 = sbr.rel (%p156) target = $region32
        $region31: #{tpu_custom_call.1} parent=27 // pred_region
          %p159 = scmp.lt.s32.totalorder %s13, 1
          %s160 = scalar_select %p159, %s13, 1
          %s161 = smul.addr %s160, 8
          %s162 = scalar_lea.vmem %s0, %s161
        $region32: #{tpu_custom_call.1} parent=27 // pred_fallthru
          _
      $region28: #{tpu_custom_call.1} parent=5 // pred_fallthru
        _
      %p163 = scmp.le.s32.totalorder 1, %s13
      %p164 = scmp.lt.s32.totalorder %s13, 3
      %p165 = pnand %p163, %p164
      %p166 = pneg %p165
      // Predicated region
      $region33: #{tpu_custom_call.1} parent=5 // pred_check
        _
      $region34: #{tpu_custom_call.1} parent=5 // pred_check_branch
        %168 = sbr.rel (%p165) target = $region36
      $region35: #{tpu_custom_call.1} parent=5 // pred_region
        %s169 = ssub.s32 %s13, 1
        %p170 = scmp.lt.s32.totalorder %s18, 1
        %s171 = scalar_select %p170, %s18, 1
        %s172 = smul.addr %s171, 8
        %s173 = scalar_lea.vmem %s0, %s172
        %p174 = pneg %p39
        %p175 = pneg %p36
        %p176 = pneg %p60
        %p177 = pneg %p57
        %p178 = pneg %p81
        %p179 = pneg %p78
        %p180 = pneg %p102
        %p181 = pneg %p99
        %p182 = pneg %p128
        %p183 = pneg %p125
        %s184 = sand.u32 %s115, 1
        %s185 = scalar_lea.sflag [#allocation3], %s184
        %s186 = sand.u32 %s115, 1
        %s187 = smul.addr %s186, 8
        %s188 = scalar_lea.vmem [#allocation2], %s187
        %p189 = scmp.lt.s32.totalorder %s18, 1
        %s190 = scalar_select %p189, %s18, 1
        %s191 = smul.addr %s190, 8
        %s192 = scalar_lea.vmem %s0, %s191
        %v193 = vld [vmem:[%s192] sm:$0xff]
        %v194 = vld [vmem:[%s1] sm:$0xff]
        %v195 = vld [vmem:[%s1 + $0x8] sm:$0xff]
        %v196 = vld [vmem:[%s1 + $0x10] sm:$0xff]
        %v197 = vld [vmem:[%s1 + $0x18] sm:$0xff]
        %v198 = vld [vmem:[%s1 + $0x20] sm:$0xff]
        %v199 = vld [vmem:[%s1 + $0x28] sm:$0xff]
        %v200 = vld [vmem:[%s1 + $0x30] sm:$0xff]
        %v201 = vld [vmem:[%s1 + $0x38] sm:$0xff]
        %v202 = vld [vmem:[%s2] sm:$0xff]
        %v203 = vld [vmem:[%s2 + $0x8] sm:$0xff]
        %v204 = vld [vmem:[%s2 + $0x10] sm:$0xff]
        %v205 = vld [vmem:[%s2 + $0x18] sm:$0xff]
        %v206 = vld [vmem:[%s2 + $0x20] sm:$0xff]
        %v207 = vld [vmem:[%s2 + $0x28] sm:$0xff]
        %v208 = vld [vmem:[%s2 + $0x30] sm:$0xff]
        %v209 = vld [vmem:[%s2 + $0x38] sm:$0xff]
        %v210 = vld [vmem:[%s3] sm:$0xff]
        %v211 = vld [vmem:[%s3 + $0x8] sm:$0xff]
        %v212 = vld [vmem:[%s3 + $0x10] sm:$0xff]
        %v213 = vld [vmem:[%s3 + $0x18] sm:$0xff]
        %v214 = vld [vmem:[%s3 + $0x20] sm:$0xff]
        %v215 = vld [vmem:[%s3 + $0x28] sm:$0xff]
        %v216 = vld [vmem:[%s3 + $0x30] sm:$0xff]
        %v217 = vld [vmem:[%s3 + $0x38] sm:$0xff]
        %vm218 = vcmask 523264
        %v220 = vsel %vm218, %v193, 0
        %222 = vmatpush.msra.mxu0 0.0
        %223 = vmatpush.msra.mxu0 0.0
        %224 = vmatpush.msra.mxu0 0.0
        %225 = vmatpush.msra.mxu0 0.0
        %226 = vmatpush.msra.mxu0 0.0
        %227 = vmatpush.msra.mxu0 0.0
        %228 = vmatpush.msra.mxu0 0.0
        %229 = vmatpush.msra.mxu0 0.0
        %230 = vmatpush.msra.mxu0 %v201
        %231 = vmatpush.msra.mxu0 %v200
        %232 = vmatpush.msra.mxu0 %v199
        %233 = vmatpush.msra.mxu0 %v198
        %234 = vmatpush.msra.mxu0 %v197
        %235 = vmatpush.msra.mxu0 %v196
        %236 = vmatpush.msra.mxu0 %v195
        %237 = vmatpush.msra.mxu0 %v194
        %238 = vmatmul.f32.gmra.mxu0 %v220
        %v239 = vpop.f32.mrf.mxu0
        %v240 = vadd.f32 0.0, %v239
        %241 = vdwg.mxu0
        %242 = vmatpush.msra.mxu0 0.0
        %243 = vmatpush.msra.mxu0 0.0
        %244 = vmatpush.msra.mxu0 0.0
        %245 = vmatpush.msra.mxu0 0.0
        %246 = vmatpush.msra.mxu0 0.0
        %247 = vmatpush.msra.mxu0 0.0
        %248 = vmatpush.msra.mxu0 0.0
        %249 = vmatpush.msra.mxu0 0.0
        %250 = vmatpush.msra.mxu0 %v209
        %251 = vmatpush.msra.mxu0 %v208
        %252 = vmatpush.msra.mxu0 %v207
        %253 = vmatpush.msra.mxu0 %v206
        %254 = vmatpush.msra.mxu0 %v205
        %255 = vmatpush.msra.mxu0 %v204
        %256 = vmatpush.msra.mxu0 %v203
        %257 = vmatpush.msra.mxu0 %v202
        %258 = vmatmul.f32.gmra.mxu0 %v220
        %v259 = vpop.f32.mrf.mxu0
        %v260 = vadd.f32 0.0, %v259
        %261 = vdwg.mxu0
        %262 = vmatpush.msra.mxu0 0.0
        %263 = vmatpush.msra.mxu0 0.0
        %264 = vmatpush.msra.mxu0 0.0
        %265 = vmatpush.msra.mxu0 0.0
        %266 = vmatpush.msra.mxu0 0.0
        %267 = vmatpush.msra.mxu0 0.0
        %268 = vmatpush.msra.mxu0 0.0
        %269 = vmatpush.msra.mxu0 0.0
        %270 = vmatpush.msra.mxu0 %v217
        %271 = vmatpush.msra.mxu0 %v216
        %272 = vmatpush.msra.mxu0 %v215
        %273 = vmatpush.msra.mxu0 %v214
        %274 = vmatpush.msra.mxu0 %v213
        %275 = vmatpush.msra.mxu0 %v212
        %276 = vmatpush.msra.mxu0 %v211
        %277 = vmatpush.msra.mxu0 %v210
        %278 = vmatmul.f32.gmra.mxu0 %v220
        %v279 = vpop.f32.mrf.mxu0
        %v280 = vadd.f32 0.0, %v279
        %281 = vdwg.mxu0
        %vm282 = vcmask 130048
        %v284 = vsel %vm282, %v260, 0
        %v287 = vsel %vm282, %v240, 0
        %289 = vmatpush.xpose.msra.mxu0 0.0
        %290 = vmatpush.xpose.msra.mxu0 0.0
        %291 = vmatpush.xpose.msra.mxu0 0.0
        %292 = vmatpush.xpose.msra.mxu0 0.0
        %293 = vmatpush.xpose.msra.mxu0 0.0
        %294 = vmatpush.xpose.msra.mxu0 0.0
        %295 = vmatpush.xpose.msra.mxu0 0.0
        %296 = vmatpush.xpose.msra.mxu0 0.0
        %297 = vmatpush.xpose.msra.mxu0 0.0
        %298 = vmatpush.xpose.msra.mxu0 0.0
        %299 = vmatpush.xpose.msra.mxu0 0.0
        %300 = vmatpush.xpose.msra.mxu0 0.0
        %301 = vmatpush.xpose.msra.mxu0 0.0
        %302 = vmatpush.xpose.msra.mxu0 0.0
        %303 = vmatpush.xpose.msra.mxu0 0.0
        %304 = vmatpush.xpose.msra.mxu0 %v287
        %305 = vmatmul.f32.gmra.mxu0 %v284
        %v306 = vpop.f32.mrf.mxu0
        %v307 = vadd.f32 0.0, %v306
        %308 = vdwg.mxu0
        %v309 = vmul.f32 %v307, 0.125
        %v310 = vlaneseq
        %v311 = vshrl.u32 %v310, 7
        %v312 = vlaneseq
        %v313 = vand.u32 %v312, 127
        %vm314 = vcmp.le.s32.totalorder %v313, %v311
        %v315 = vsel %vm314, %v309, -inf
        %vm316 = vcmask 64512
        %v317 = vsel %vm316, %v315, -inf
        %318 = vmax.xlane.f32.xlu0 %v317
        %v319 = vpop.xlane.xlu0 %318
        %v320 = vsub.f32 %v315, %v319
        %v321 = vmul.f32 %v320, 1.442695
        %v322 = vpow.pop %v321
        %v323 = vsel %vm316, %v322, 0.0
        %324 = vadd.xlane.f32.xlu0 %v323
        %v325 = vpop.xlane.xlu0 %324
        %v326 = vrcp.pop %v325
        %v327 = vmul.f32 %v325, %v326
        %v328 = vsub.f32 1.0, %v327
        %v329 = vmul.f32 %v326, %v328
        %v330 = vadd.f32 %v326, %v329
        %vm331 = vweird.f32 %v325
        %vm332 = vweird.f32 %v326
        %vm333 = vmor %vm331, %vm332
        %v334 = vsel %vm333, %v326, %v330
        %v335 = vand.u32 2147483647, %v325
        %vm336 = vcmp.eq.f32.partialorder %v335, 8.507059e+37
        %v337 = vand.u32 %v325, 2147483648
        %v338 = vor.u32 1.1754944e-38, %v337
        %v339 = vsel %vm336, %v338, %v334
        %v340 = vmul.f32 %v322, %v339
        %v342 = vsel %vm316, %v340, 0
        %344 = vmatpush.msra.mxu0 0.0
        %345 = vmatpush.msra.mxu0 0.0
        %346 = vmatpush.msra.mxu0 0.0
        %347 = vmatpush.msra.mxu0 0.0
        %348 = vmatpush.msra.mxu0 0.0
        %349 = vmatpush.msra.mxu0 0.0
        %350 = vmatpush.msra.mxu0 0.0
        %351 = vmatpush.msra.mxu0 0.0
        %352 = vmatpush.msra.mxu0 0.0
        %353 = vmatpush.msra.mxu0 0.0
        %354 = vmatpush.msra.mxu0 0.0
        %355 = vmatpush.msra.mxu0 0.0
        %356 = vmatpush.msra.mxu0 0.0
        %357 = vmatpush.msra.mxu0 0.0
        %358 = vmatpush.msra.mxu0 0.0
        %359 = vmatpush.msra.mxu0 %v280
        %360 = vmatmul.f32.gmra.mxu0 %v342
        %v361 = vpop.f32.mrf.mxu0
        %v362 = vadd.f32 0.0, %v361
        %363 = vdwg.mxu0
        %364 = vst.msk [vmem:[%s188] sm:$0xff] %vm282, %v362
        %s365 = sand.u32 %s115, 1
        %s366 = scalar_lea.sflag [#allocation3], %s365
        %s367 = sand.u32 %s115, 1
        %s368 = smul.addr %s367, 8
        %s369 = scalar_lea.vmem [#allocation2], %s368
        // Predicated region
        $region37: #{tpu_custom_call.1} parent=35 // pred_check
          %p370 = pneg %p125
        $region38: #{tpu_custom_call.1} parent=35 // pred_check_branch
          %372 = sbr.rel (%p370) target = $region40
        $region39: #{tpu_custom_call.1} parent=35 // pred_region
          %374 = vsyncadd %s366, 0
          %s375 = smul.addr %s18, 8
          %s376 = scalar_lea.hbm %s4, %s375
          %s378 = sshll.u32 %s369, 4
          %s379 = int_to_ptr.vmem [resolvable:$true] %s378
          %s380 = sshll.u32 %s376, 4
          %s381 = int_to_ptr.hbm [resolvable:$true] %s380
          %383 = dma.vmem_to_hbm [thread:$0]  %s379, 128, %s381, %s366
        $region40: #{tpu_custom_call.1} parent=35 // pred_fallthru
          _
      $region36: #{tpu_custom_call.1} parent=5 // pred_fallthru
        _
      %p384 = scmp.le.s32.totalorder 2, %s13
      // Predicated region
      $region41: #{tpu_custom_call.1} parent=5 // pred_check
        %p385 = pneg %p384
      $region42: #{tpu_custom_call.1} parent=5 // pred_check_branch
        %387 = sbr.rel (%p385) target = $region44
      $region43: #{tpu_custom_call.1} parent=5 // pred_region
        %s388 = ssub.s32 %s13, 2
        // Predicated region
        $region45: #{tpu_custom_call.1} parent=43 // pred_check
          %p389 = pneg %p131
        $region46: #{tpu_custom_call.1} parent=43 // pred_check_branch
          %391 = sbr.rel (%p389) target = $region48
        $region47: #{tpu_custom_call.1} parent=43 // pred_region
          %s392 = sand.u32 %s116, 1
          %s393 = scalar_lea.sflag [#allocation3], %s392
          %s394 = sand.u32 %s116, 1
          %s395 = smul.addr %s394, 8
          %s396 = scalar_lea.vmem [#allocation2], %s395
          %398 = dma.done %s393, 128
        $region48: #{tpu_custom_call.1} parent=43 // pred_fallthru
          _
      $region44: #{tpu_custom_call.1} parent=5 // pred_fallthru
        _
    $region6: #{tpu_custom_call.1} parent=1 // loop_footer
      %s17 = sadd.s32 1, %s13
    $region7: #{tpu_custom_call.1} parent=1 // loop_footer_branch
      %12 = sbr.rel target = $region3
    $region8: #{tpu_custom_call.1} parent=1 // loop_exit
      _
    %399 = vsyncpa [#allocation3], 1
    %s400 = scalar_lea.sflag [#allocation3], 1
    %401 = vsyncpa %s400, 1

</llo_original>
